<compile_context>
chip_gen: v6e
topology: v6e:2x2x1
jax: 0.10.0
libtpu: 0.0.40
codegen_flags: <defaults>
</compile_context>

<pallas_src>
import functools
import math

import jax
import jax.numpy as jnp
import numpy as np
from jax import lax
from jax.experimental import pallas as pl
from jax.experimental.pallas import tpu as pltpu

_ROW_TILE = 512        # streaming row tile for the projection kernels
_NEG_BIG = -1e30       # finite "minus infinity" for masked logits


def _infer_vmem_limit():
    """Generation-aware scoped-VMEM limit (96 MiB on 128-MiB parts, 48 on v7x)."""
    cap = 0
    try:
        cap = int(getattr(pltpu.get_tpu_info(), "vmem_capacity_bytes", 0))
    except Exception:
        cap = 0
    if cap <= 0:
        cap = 64 * 1024 * 1024          # conservative: v7x physical VMEM
    return int(min(cap * 3 // 4, 100 * 1024 * 1024))


_VMEM_LIMIT = _infer_vmem_limit()


def _pick_edge_tile(n_edges, n_nodes, hc, n_heads, vmem_budget, cap=None):
    """Pick the edge-tile size from the VMEM budget (multiple of 8 or == E)."""
    per_edge = 4 * n_nodes + 24 * hc + 8 * n_heads + 64          # bytes in flight / edge
    resident = 16 * n_nodes * hc + 16 * n_nodes * n_heads + (2 << 20)
    budget = max(vmem_budget - resident, per_edge * 8)
    t = int(max(8, min(budget // per_edge, 2048)))
    if cap is not None:
        t = int(min(t, max(8, int(cap))))
    if t >= n_edges:
        return n_edges
    return (t // 8) * 8


# ----------------------------------------------------------------------------
# Projection kernels (row-tiled, resident weights, lane-dense outputs)
# ----------------------------------------------------------------------------
def _linear_kernel(x_ref, w_ref, b_ref, o_ref):
    o_ref[...] = (
        jnp.dot(x_ref[...], w_ref[...], preferred_element_type=jnp.float32)
        + b_ref[...]
    )


def pallas_linear(x, w, b, *, row_tile=_ROW_TILE):
    """y = x @ w + b  (single lane-dense output, no per-head narrow tiles)."""
    m, d_in = x.shape
    d_out = w.shape[1]
    tm = m if m <= row_tile else row_tile
    return pl.pallas_call(
        _linear_kernel,
        out_shape=jax.ShapeDtypeStruct((m, d_out), jnp.float32),
        grid=(pl.cdiv(m, tm),),
        in_specs=[
            pl.BlockSpec((tm, d_in), lambda i: (i, 0)),
            pl.BlockSpec((d_in, d_out), lambda i: (0, 0)),   # resident weight
            pl.BlockSpec((1, d_out), lambda i: (0, 0)),
        ],
        out_specs=pl.BlockSpec((tm, d_out), lambda i: (i, 0)),
        compiler_params=pltpu.CompilerParams(
            dimension_semantics=("parallel",),
            vmem_limit_bytes=_VMEM_LIMIT),
    )(x, w, b.reshape(1, d_out))


def _fused_edge_proj_kernel(z_ref, w_ref, b_ref, k_ref, v_ref, e_ref, *, hc):
    # One matmul Z @ [Wk | Wv | We]; lane-slice the three outputs.
    y = (jnp.dot(z_ref[...], w_ref[...], preferred_element_type=jnp.float32)
         + b_ref[...])
    k_ref[...] = y[:, :hc]
    v_ref[...] = y[:, hc:2 * hc]
    e_ref[...] = y[:, 2 * hc:]


def pallas_fused_edge_proj(z, w_kve, b_kve, *, hc, out_dim, row_tile=_ROW_TILE):
    """K, V and the edge projection from one Z read: Z @ [Wk|Wv|We] + b."""
    e, d = z.shape
    d_out = w_kve.shape[1]
    tm = e if e <= row_tile else row_tile
    kernel = functools.partial(_fused_edge_proj_kernel, hc=hc)
    return pl.pallas_call(
        kernel,
        out_shape=(jax.ShapeDtypeStruct((e, hc), jnp.float32),
                   jax.ShapeDtypeStruct((e, hc), jnp.float32),
                   jax.ShapeDtypeStruct((e, out_dim), jnp.float32)),
        grid=(pl.cdiv(e, tm),),
        in_specs=[
            pl.BlockSpec((tm, d), lambda i: (i, 0)),
            pl.BlockSpec((d, d_out), lambda i: (0, 0)),       # resident weight
            pl.BlockSpec((1, d_out), lambda i: (0, 0)),
        ],
        out_specs=(pl.BlockSpec((tm, hc), lambda i: (i, 0)),
                   pl.BlockSpec((tm, hc), lambda i: (i, 0)),
                   pl.BlockSpec((tm, out_dim), lambda i: (i, 0))),
        compiler_params=pltpu.CompilerParams(
            dimension_semantics=("parallel",),
            vmem_limit_bytes=_VMEM_LIMIT),
    )(z, w_kve, b_kve.reshape(1, d_out))


# ----------------------------------------------------------------------------
# Main attention kernel: all heads in one pass, online segment softmax over
# edge tiles.  Outputs:
#   out   (N, H*C)  normalized attention output (module concat layout)
#   logit (E, H)    per-edge per-head scaled logits (for the debug pass)
#   l     (N, H)    per-node softmax denominators
#   m     (1, H)    per-head max used for stabilization
# ----------------------------------------------------------------------------
def _segment_attn_kernel(src_ref, q_ref, k_ref, v_ref,
                         o_ref, logit_ref, l_ref, m_ref,
                         *, num_heads, head_dim, n_edges, tile_e, ragged):
    h_n, c = num_heads, head_dim
    hc = h_n * c
    n_nodes = q_ref.shape[0]
    e_idx = pl.program_id(0)

    @pl.when(e_idx == 0)
    def _init():
        o_ref[...] = jnp.zeros_like(o_ref)
        l_ref[...] = jnp.zeros_like(l_ref)
        m_ref[...] = jnp.full_like(m_ref, _NEG_BIG)

    src = src_ref[...]                                            # (tE, 1) int32
    q = q_ref[...]                                                # (N, HC)
    k = k_ref[...]                                                # (tE, HC)
    v = v_ref[...]                                                # (tE, HC)

    # One-hot of src built in-register (no (E, N) array ever touches HBM).
    cols = lax.broadcasted_iota(jnp.int32, (tile_e, n_nodes), 1)
    hit = src == cols                                             # (tE, N) bool

    if ragged:   # static flag: only traced when E % tile_e != 0
        local = lax.broadcasted_iota(jnp.int32, (tile_e, 1), 0)
        valid = (e_idx * tile_e + local) < n_edges                # (tE, 1) bool
        hit = jnp.logical_and(hit, valid)
        k = jnp.where(valid, k, 0.0)
        v = jnp.where(valid, v, 0.0)

    s = hit.astype(jnp.float32)                                   # (tE, N)

    # Tiny 0/1 segment selectors built from iota (per-head sum / expand on MXU).
    drow = lax.broadcasted_iota(jnp.int32, (hc, h_n), 0)
    hcol = lax.broadcasted_iota(jnp.int32, (hc, h_n), 1)
    seg = jnp.logical_and(drow >= hcol * c, drow < (hcol + 1) * c).astype(jnp.float32)
    hrow = lax.broadcasted_iota(jnp.int32, (h_n, hc), 0)
    dcol = lax.broadcasted_iota(jnp.int32, (h_n, hc), 1)
    seg_t = jnp.logical_and(dcol >= hrow * c, dcol < (hrow + 1) * c).astype(jnp.float32)

    # Q[src] gather and per-edge per-head logits, both on the MXU.
    q_e = jnp.dot(s, q, preferred_element_type=jnp.float32)       # (tE, HC)
    logit = jnp.dot(q_e * k, seg, preferred_element_type=jnp.float32)
    logit = logit * jnp.float32(1.0 / math.sqrt(c))               # (tE, H)
    if ragged:
        logit = jnp.where(valid, logit, _NEG_BIG)
    logit_ref[...] = logit

    # Online softmax across edge tiles with a per-head running max.
    # (Per-node max dropped per review; exp(x - head_max) cannot overflow and
    #  underflow needs a >87 logit gap, far beyond realistic attention logits.)
    m_prev = m_ref[...]                                           # (1, H)
    m_new = jnp.maximum(m_prev, jnp.max(logit, axis=0, keepdims=True))
    alpha = jnp.exp(m_prev - m_new)                               # (1, H)
    p = jnp.exp(logit - m_new)                                    # (tE, H)

    p_hc = jnp.dot(p, seg_t, preferred_element_type=jnp.float32)          # (tE, HC)
    alpha_hc = jnp.dot(alpha, seg_t, preferred_element_type=jnp.float32)  # (1, HC)

    # Scatter-add to nodes on the MXU: S^T @ (p*V) and S^T @ p.
    acc_contrib = lax.dot_general(s, p_hc * v, (((0,), (0,)), ((), ())),
                                  preferred_element_type=jnp.float32)     # (N, HC)
    l_contrib = lax.dot_general(s, p, (((0,), (0,)), ((), ())),
                                preferred_element_type=jnp.float32)       # (N, H)

    o_new = o_ref[...] * alpha_hc + acc_contrib
    l_new = l_ref[...] * alpha + l_contrib
    o_ref[...] = o_new
    l_ref[...] = l_new
    m_ref[...] = m_new

    @pl.when(e_idx == pl.num_programs(0) - 1)
    def _finalize():
        l_hc = jnp.dot(l_new, seg_t, preferred_element_type=jnp.float32)  # (N, HC)
        # Nodes with no outgoing edges keep an exactly-zero output (module:
        # nothing was scattered into their row).
        inv = jnp.where(l_hc > 0.0, 1.0 / l_hc, 0.0)
        o_ref[...] = o_new * inv


def pallas_segment_attention(src_col, q_all, k_all, v_all, *, num_heads, head_dim,
                             tile_e):
    n_nodes, hc = q_all.shape
    n_edges = k_all.shape[0]
    h_n = num_heads
    n_tiles = pl.cdiv(n_edges, tile_e)
    ragged = (n_edges % tile_e) != 0
    kernel = functools.partial(
        _segment_attn_kernel, num_heads=h_n, head_dim=head_dim,
        n_edges=n_edges, tile_e=tile_e, ragged=ragged)
    return pl.pallas_call(
        kernel,
        out_shape=(jax.ShapeDtypeStruct((n_nodes, hc), jnp.float32),
                   jax.ShapeDtypeStruct((n_edges, h_n), jnp.float32),
                   jax.ShapeDtypeStruct((n_nodes, h_n), jnp.float32),
                   jax.ShapeDtypeStruct((1, h_n), jnp.float32)),
        grid=(n_tiles,),
        in_specs=[
            pl.BlockSpec((tile_e, 1), lambda e: (e, 0)),       # src indices
            pl.BlockSpec((n_nodes, hc), lambda e: (0, 0)),     # Q, resident
            pl.BlockSpec((tile_e, hc), lambda e: (e, 0)),      # K tile
            pl.BlockSpec((tile_e, hc), lambda e: (e, 0)),      # V tile
        ],
        out_specs=(pl.BlockSpec((n_nodes, hc), lambda e: (0, 0)),   # accumulator
                   pl.BlockSpec((tile_e, h_n), lambda e: (e, 0)),
                   pl.BlockSpec((n_nodes, h_n), lambda e: (0, 0)),
                   pl.BlockSpec((1, h_n), lambda e: (0, 0))),
        compiler_params=pltpu.CompilerParams(
            dimension_semantics=("arbitrary",),   # edge axis is a reduction
            vmem_limit_bytes=_VMEM_LIMIT),
    )(src_col, q_all, k_all, v_all)


# ----------------------------------------------------------------------------
# Optional debug pass: dense (N, H, N) attention matrix, reusing the hot
# kernel's logits / denominators.  Lane-dense (N, H*N) output.
# ----------------------------------------------------------------------------
def _attn_matrix_kernel(src_ref, dst_ref, logit_ref, l_ref, m_ref, att_ref,
                        *, num_heads, n_nodes, n_edges, tile_e):
    h_n = num_heads
    n = n_nodes
    e_idx = pl.program_id(0)

    @pl.when(e_idx == 0)
    def _init():
        att_ref[...] = jnp.zeros_like(att_ref)

    src = src_ref[...]
    dst = dst_ref[...]
    local = lax.broadcasted_iota(jnp.int32, (tile_e, 1), 0)
    valid = (e_idx * tile_e + local) < n_edges
    cols = lax.broadcasted_iota(jnp.int32, (tile_e, n), 1)
    s = jnp.where(jnp.logical_and(src == cols, valid), 1.0, 0.0)   # (tE, N)
    t = jnp.where(jnp.logical_and(dst == cols, valid), 1.0, 0.0)   # (tE, N)

    logit = logit_ref[...]                                         # (tE, H)
    l_nodes = l_ref[...]                                           # (N, H)
    m = m_ref[...]                                                 # (1, H)

    l_e = jnp.dot(s, l_nodes, preferred_element_type=jnp.float32)  # (tE, H)
    p = jnp.exp(logit - m)
    a = jnp.where(l_e > 0.0, p / l_e, 0.0)                         # normalized weight
    a = jnp.where(valid, a, 0.0)

    for h in range(h_n):
        contrib = lax.dot_general(s * a[:, h:h + 1], t, (((0,), (0,)), ((), ())),
                                  preferred_element_type=jnp.float32)  # (N, N)
        att_ref[:, h * n:(h + 1) * n] = att_ref[:, h * n:(h + 1) * n] + contrib

    @pl.when(e_idx == pl.num_programs(0) - 1)
    def _finalize():
        uniform = jnp.float32(1.0 / n)
        for h in range(h_n):
            # Module: softmax of an all -9e15 row (node with no outgoing edges)
            # is the uniform distribution 1/N.
            no_edges = l_nodes[:, h:h + 1] <= 0.0                  # (N, 1)
            blk = att_ref[:, h * n:(h + 1) * n]
            att_ref[:, h * n:(h + 1) * n] = jnp.where(no_edges, uniform, blk)


def pallas_attention_matrix(src_col, dst_col, logit, l, m, *, num_heads, n_nodes,
                            tile_e):
    n_edges = src_col.shape[0]
    h_n = num_heads
    n_tiles = pl.cdiv(n_edges, tile_e)
    kernel = functools.partial(_attn_matrix_kernel, num_heads=h_n,
                               n_nodes=n_nodes, n_edges=n_edges, tile_e=tile_e)
    return pl.pallas_call(
        kernel,
        out_shape=jax.ShapeDtypeStruct((n_nodes, h_n * n_nodes), jnp.float32),
        grid=(n_tiles,),
        in_specs=[
            pl.BlockSpec((tile_e, 1), lambda e: (e, 0)),
            pl.BlockSpec((tile_e, 1), lambda e: (e, 0)),
            pl.BlockSpec((tile_e, h_n), lambda e: (e, 0)),
            pl.BlockSpec((n_nodes, h_n), lambda e: (0, 0)),
            pl.BlockSpec((1, h_n), lambda e: (0, 0)),
        ],
        out_specs=pl.BlockSpec((n_nodes, h_n * n_nodes), lambda e: (0, 0)),
        compiler_params=pltpu.CompilerParams(
            dimension_semantics=("arbitrary",),
            vmem_limit_bytes=_VMEM_LIMIT),
    )(src_col, dst_col, logit, l, m)


# ----------------------------------------------------------------------------
# YATE_Attention forward (concat=True), parameters passed explicitly
# ----------------------------------------------------------------------------
def yate_attention_forward(x, edge_index, edge_feat, params, num_heads, output_dim,
                           return_attention=False, max_edge_tile=None):
    n_nodes, _ = x.shape
    n_edges = edge_feat.shape[0]
    h_n = num_heads
    c = output_dim // h_n
    hc = h_n * c

    src = edge_index[0].astype(jnp.int32).reshape(n_edges, 1)
    dst = edge_index[1].astype(jnp.int32)

    # Glue op (dynamic row gather handled by XLA).
    # TODO(synk): fold the x[dst] gather into the fused projection via
    #             scalar-prefetched row indices.
    z = edge_feat * x[dst]

    # Lane-dense projections: Q in one (N, H*C) matmul; K/V/edge fused over Z.
    q_all = pallas_linear(x, params["wq"], params["bq"])               # (N, HC)
    w_kve = jnp.concatenate([params["wk"], params["wv"], params["we"]], axis=1)
    b_kve = jnp.concatenate([params["bk"], params["bv"], params["be"]], axis=0)
    k_all, v_all, edge_out = pallas_fused_edge_proj(
        z, w_kve, b_kve, hc=hc, out_dim=output_dim)

    tile_e = _pick_edge_tile(n_edges, n_nodes, hc, h_n, _VMEM_LIMIT,
                             cap=max_edge_tile)
    out, logit, l, m = pallas_segment_attention(
        src, q_all, k_all, v_all, num_heads=h_n, head_dim=c, tile_e=tile_e)

    if not return_attention:
        return out, edge_out

    att_flat = pallas_attention_matrix(
        src, dst.reshape(n_edges, 1), logit, l, m,
        num_heads=h_n, n_nodes=n_nodes, tile_e=tile_e)
    attention = att_flat.reshape(n_nodes, h_n, n_nodes)
    return out, edge_out, attention


# ----------------------------------------------------------------------------
# plain-JAX reference (mirrors the PyTorch loops via scatter)
# ----------------------------------------------------------------------------
def reference_forward(x, edge_index, edge_feat, params, num_heads, output_dim):
    n = x.shape[0]
    h_n = num_heads
    c = output_dim // h_n
    src, dst = edge_index[0], edge_index[1]
    z = edge_feat * x[dst]
    q = (x @ params["wq"] + params["bq"]).reshape(n, h_n, c)
    k = (z @ params["wk"] + params["bk"]).reshape(-1, h_n, c)
    v = (z @ params["wv"] + params["bv"]).reshape(-1, h_n, c)
    outs, atts = [], []
    for h in range(h_n):
        q_h, k_h, v_h = q[:, h], k[:, h], v[:, h]
        logit_e = jnp.sum(q_h[src] * k_h, axis=-1)
        att_logit = jnp.zeros((n, n), jnp.float32).at[src, dst].set(logit_e)
        att_logit = att_logit / math.sqrt(c)
        masked = jnp.where(att_logit != 0.0, att_logit, -9e15)
        attn = jax.nn.softmax(masked, axis=1)
        o = jnp.zeros((n, n, c), jnp.float32).at[src, dst].set(
            attn[src, dst][:, None] * v_h)
        outs.append(o.sum(axis=1))
        atts.append(attn)
    out = jnp.stack(outs, axis=1).reshape(n, h_n * c)
    att = jnp.stack(atts, axis=1)                 # (N, H, N)
    edge = z @ params["we"] + params["be"]
    return out, edge, att


# ----------------------------------------------------------------------------
if __name__ == "__main__":
    def init_linear(kw, kb, din, dout):
        bound = 1.0 / math.sqrt(din)
        w = jax.random.uniform(kw, (din, dout), jnp.float32, -bound, bound)
        b = jax.random.uniform(kb, (dout,), jnp.float32, -bound, bound)
        return w, b

    def make_case(key, n_nodes, n_edges, d_in, out_dim):
        ks = jax.random.split(key, 10)
        wq, bq = init_linear(ks[0], ks[1], d_in, out_dim)
        wk, bk = init_linear(ks[2], ks[3], d_in, out_dim)
        wv, bv = init_linear(ks[4], ks[5], d_in, out_dim)
        we, be = init_linear(ks[6], ks[7], d_in, out_dim)
        params = dict(wq=wq, bq=bq, wk=wk, bk=bk, wv=wv, bv=bv, we=we, be=be)
        x = jax.random.normal(ks[8], (n_nodes, d_in), jnp.float32)
        edge_feat = jax.random.normal(ks[9], (n_edges, d_in), jnp.float32)
        return params, x, edge_feat

    def check(pallas_res, ref_res):
        for a, b in zip(pallas_res, ref_res):
            np.testing.assert_allclose(np.asarray(a), np.asarray(b),
                                       rtol=1e-4, atol=1e-4)

    key = jax.random.PRNGKey(0)
    k1, k2 = jax.random.split(key)

    # --- Test 1: tiny graph, single edge tile, node N-1 has no outgoing edges
    N1, E1, D1, OUT1, H1 = 8, 16, 16, 32, 2
    params1, x1, ef1 = make_case(k1, N1, E1, D1, OUT1)
    idx = np.arange(E1)
    src1 = idx % (N1 - 1)
    dst1 = (src1 + 1 + idx // (N1 - 1)) % N1
    ei1 = jnp.asarray(np.stack([src1, dst1], axis=0), dtype=jnp.int32)

    out1, edge1, att1 = yate_attention_forward(
        x1, ei1, ef1, params1, num_heads=H1, output_dim=OUT1,
        return_attention=True)
    jax.block_until_ready((out1, edge1, att1))
    out1b, edge1b = yate_attention_forward(
        x1, ei1, ef1, params1, num_heads=H1, output_dim=OUT1,
        return_attention=False)
    jax.block_until_ready((out1b, edge1b))

    ref1 = reference_forward(x1, ei1, ef1, params1, H1, OUT1)
    check((out1, edge1, att1), ref1)
    check((out1b, edge1b), ref1[:2])

    # --- Test 2: multi-tile online-softmax path (forced edge tile of 32),
    #             unique (src, dst) pairs, nodes 21..23 have no outgoing edges.
    N2, E2, D2, OUT2, H2 = 24, 96, 16, 32, 2
    params2, x2, ef2 = make_case(k2, N2, E2, D2, OUT2)
    p = (np.arange(E2) * 5) % (N2 * (N2 - 1))
    src2 = p // (N2 - 1)
    r = p % (N2 - 1)
    dst2 = r + (r >= src2)
    ei2 = jnp.asarray(np.stack([src2, dst2], axis=0), dtype=jnp.int32)

    out2, edge2, att2 = yate_attention_forward(
        x2, ei2, ef2, params2, num_heads=H2, output_dim=OUT2,
        return_attention=True, max_edge_tile=32)
    jax.block_until_ready((out2, edge2, att2))

    ref2 = reference_forward(x2, ei2, ef2, params2, H2, OUT2)
    check((out2, edge2, att2), ref2)

    print("KERNEL_OK")
</pallas_src>

<mosaic_0001>
module attributes {stable_mosaic.version = 11 : i64} {
  func.func @_linear_kernel(%arg0: i32, %arg1: memref<8x16xf32, #tpu.memory_space<vmem>>, %arg2: memref<16x32xf32, #tpu.memory_space<vmem>>, %arg3: memref<1x32xf32, #tpu.memory_space<vmem>>, %arg4: memref<8x32xf32, #tpu.memory_space<vmem>>) attributes {dimension_semantics = [#tpu.dimension_semantics<parallel>], iteration_bounds = array<i64: 1>, scalar_prefetch = 0 : i64, scratch_operands = 0 : i64, tpu.core_type = #tpu.core_type<tc>, window_params = [{transform_indices = @transform_0, window_bounds = array<i64: 8, 16>}, {pipeline_mode = #tpu.pipeline_mode<synchronous>, transform_indices = @transform_1, window_bounds = array<i64: 16, 32>}, {pipeline_mode = #tpu.pipeline_mode<synchronous>, transform_indices = @transform_2, window_bounds = array<i64: 1, 32>}, {transform_indices = @transform_3, window_bounds = array<i64: 8, 32>}]} {
    %c0 = arith.constant 0 : index
    %c0_0 = arith.constant 0 : index
    %0 = vector.load %arg1[%c0, %c0_0] : memref<8x16xf32, #tpu.memory_space<vmem>>, vector<8x16xf32>
    %c0_1 = arith.constant 0 : index
    %c0_2 = arith.constant 0 : index
    %1 = vector.load %arg2[%c0_1, %c0_2] : memref<16x32xf32, #tpu.memory_space<vmem>>, vector<16x32xf32>
    %cst = arith.constant dense<0.000000e+00> : vector<8x32xf32>
    %2 = tpu.matmul %0, %1, %cst {dimension_numbers = #tpu.dot_dimension_numbers<[1], [0], [0], [1], [0, 0, 1, 1], [], []>} : vector<8x16xf32>, vector<16x32xf32>, vector<8x32xf32> -> vector<8x32xf32>
    %c0_3 = arith.constant 0 : index
    %c0_4 = arith.constant 0 : index
    %3 = vector.load %arg3[%c0_3, %c0_4] : memref<1x32xf32, #tpu.memory_space<vmem>>, vector<1x32xf32>
    %4 = vector.broadcast %3 : vector<1x32xf32> to vector<8x32xf32>
    %5 = arith.addf %2, %4 : vector<8x32xf32>
    %c0_5 = arith.constant 0 : index
    %c0_6 = arith.constant 0 : index
    %6 = vector.load %arg4[%c0_5, %c0_6] : memref<8x32xf32, #tpu.memory_space<vmem>>, vector<8x32xf32>
    tpu.vector_store %arg4[%c0_5, %c0_6], %5 {strides = array<i32>} : memref<8x32xf32, #tpu.memory_space<vmem>>, vector<8x32xf32>,
    return
  }
  func.func @transform_0(%arg0: i32) -> (i32, i32) {
    %c0_i32 = arith.constant 0 : i32
    %c0_i32_0 = arith.constant 0 : i32
    return %arg0, %c0_i32 : i32, i32
  }
  func.func @transform_1(%arg0: i32) -> (i32, i32) {
    %c0_i32 = arith.constant 0 : i32
    %c0_i32_0 = arith.constant 0 : i32
    %c0_i32_1 = arith.constant 0 : i32
    return %c0_i32, %c0_i32_0 : i32, i32
  }
  func.func @transform_2(%arg0: i32) -> (i32, i32) {
    %c0_i32 = arith.constant 0 : i32
    %c0_i32_0 = arith.constant 0 : i32
    %c0_i32_1 = arith.constant 0 : i32
    return %c0_i32, %c0_i32_0 : i32, i32
  }
  func.func @transform_3(%arg0: i32) -> (i32, i32) {
    %c0_i32 = arith.constant 0 : i32
    %c0_i32_0 = arith.constant 0 : i32
    return %arg0, %c0_i32 : i32, i32
  }
}

</mosaic_0001>

<llo_original>
// kernel: tpu_custom_call.1
$region0: #{tpu_custom_call.1}
  #allocation0 [shape = 'u32[]', space=smem, size = 0x4, offset = 0x4, fixed_abs, tag = 'smem constant byte address 0x4 - core index']
  #allocation1 [shape = 'u32[144,128]{1,0:T(1,128)}', space=vmem, size = 0x12000, scoped, tag = 'internal scratch']
  %s0 = inlined_call_operand.hbm [shape: f32[8,16], index: 0, kind: input, shape index: {}]
  %s1 = inlined_call_operand.hbm [shape: f32[16,32], index: 1, kind: input, shape index: {}]
  %s2 = inlined_call_operand.vmem [shape: f32[1,32], index: 2, kind: input, shape index: {}]
  %s3 = inlined_call_operand.hbm [shape: f32[8,32], index: 3, kind: output, shape index: {}]
  %s4 = sld [smem:[#allocation0]]
  $region30: #{tpu_custom_call.1} parent=0
    _
  %s6 = ssub.s32 1, %s4
  %s7 = scalar_select 0, %s6, %s4
  $region1: #{tpu_custom_call.1} parent=0
    #allocation2 [shape = 'u8[4096]{0}', space=vmem, size = 0x1000, scoped, tag = 'input window, operand 0, single buffered']
    #allocation3 [shape = 's32[1]{0}', space=sflag, size = 0x4, scoped, tag = 'scoped memory for tpu_custom_call.1']
    #allocation4 [shape = 's32[1]{0}', space=sflag, size = 0x4, scoped, tag = 'scoped memory for tpu_custom_call.1']
    #allocation5 [shape = 'u8[8192]{0}', space=vmem, size = 0x2000, scoped, tag = 'input window, operand 1, single buffered']
    #allocation6 [shape = 's32[1]{0}', space=sflag, size = 0x4, scoped, tag = 'scoped memory for tpu_custom_call.1']
    #allocation7 [shape = 'u8[4096]{0}', space=vmem, size = 0x1000, scoped, tag = 'output window, operand 0, single buffered']
    %8 = vsyncpa [#allocation3], 0
    %9 = vsyncpa [#allocation6], 0
    %10 = vsyncpa [#allocation4], 0
    // Predicated region
    $region2: #{tpu_custom_call.1} parent=1 // pred_check
      _
    $region3: #{tpu_custom_call.1} parent=1 // pred_check_branch
      %12 = sbr.rel (0) target = $region5
    $region4: #{tpu_custom_call.1} parent=1 // pred_region
      %s14 = ssub.s32 128, 128
      %15 = vsyncadd [#allocation3], %s14
      %s17 = sshll.u32 [#allocation2], 4
      %s18 = int_to_ptr.vmem [resolvable:$true] %s17
      %20 = dma.hbm_to_vmem [thread:$0]  %s0, 128, %s18, [#allocation3]
    $region5: #{tpu_custom_call.1} parent=1 // pred_fallthru
      _
    // Predicated region
    $region6: #{tpu_custom_call.1} parent=1 // pred_check
      _
    $region7: #{tpu_custom_call.1} parent=1 // pred_check_branch
      %22 = sbr.rel (0) target = $region9
    $region8: #{tpu_custom_call.1} parent=1 // pred_region
      %s24 = ssub.s32 256, 256
      %25 = vsyncadd [#allocation6], %s24
      %s26 = sshll.u32 [#allocation5], 4
      %s27 = int_to_ptr.vmem [resolvable:$true] %s26
      %32 = dma.hbm_to_vmem [thread:$0]  %s1, 256, %s27, [#allocation6], 128, 128, 8
    $region9: #{tpu_custom_call.1} parent=1 // pred_fallthru
      _
    // Predicated region
    $region10: #{tpu_custom_call.1} parent=1 // pred_check
      _
    $region11: #{tpu_custom_call.1} parent=1 // pred_check_branch
      %34 = sbr.rel (0) target = $region13
    $region12: #{tpu_custom_call.1} parent=1 // pred_region
      _
    $region13: #{tpu_custom_call.1} parent=1 // pred_fallthru
      _
    // Predicated region
    $region14: #{tpu_custom_call.1} parent=1 // pred_check
      _
    $region15: #{tpu_custom_call.1} parent=1 // pred_check_branch
      %36 = sbr.rel (0) target = $region17
    $region16: #{tpu_custom_call.1} parent=1 // pred_region
      %37 = dma.done [#allocation3], 128
    $region17: #{tpu_custom_call.1} parent=1 // pred_fallthru
      _
    // Predicated region
    $region18: #{tpu_custom_call.1} parent=1 // pred_check
      _
    $region19: #{tpu_custom_call.1} parent=1 // pred_check_branch
      %39 = sbr.rel (0) target = $region21
    $region20: #{tpu_custom_call.1} parent=1 // pred_region
      %40 = dma.done [#allocation6], 256
    $region21: #{tpu_custom_call.1} parent=1 // pred_fallthru
      _
    %v41 = vld [vmem:[#allocation2] sm:$0xff]
    %v42 = vld [vmem:[#allocation5] sm:$0xff]
    %v43 = vld [vmem:[#allocation5 + $0x8] sm:$0xff]
    %v44 = vld [vmem:[%s2] sm:$0x1]
    %v46 = vlaneseq
    %v47 = vshrl.u32 %v46, 7
    %v48 = vsub.s32 0, %v47
    %v49 = vrot.slane %v44, %v48
    %vm51 = vcmask 130048
    %v53 = vsel %vm51, %v41, 0
    %55 = vmatprep.subr.mxu0 0.0
    %56 = vmatpush1.msra.mxu0 0.0
    %57 = vmatprep.subr.mxu0 0.0
    %58 = vmatpush1.msra.mxu0 0.0
    %59 = vmatprep.subr.mxu0 0.0
    %60 = vmatpush1.msra.mxu0 0.0
    %61 = vmatprep.subr.mxu0 0.0
    %62 = vmatpush1.msra.mxu0 0.0
    %63 = vmatprep.subr.mxu0 0.0
    %64 = vmatpush1.msra.mxu0 0.0
    %65 = vmatprep.subr.mxu0 0.0
    %66 = vmatpush1.msra.mxu0 0.0
    %67 = vmatprep.subr.mxu0 0.0
    %68 = vmatpush1.msra.mxu0 0.0
    %69 = vmatprep.subr.mxu0 0.0
    %70 = vmatpush1.msra.mxu0 0.0
    %71 = vmatprep.subr.mxu0 0.0
    %72 = vmatpush1.msra.mxu0 0.0
    %73 = vmatprep.subr.mxu0 0.0
    %74 = vmatpush1.msra.mxu0 0.0
    %75 = vmatprep.subr.mxu0 0.0
    %76 = vmatpush1.msra.mxu0 0.0
    %77 = vmatprep.subr.mxu0 0.0
    %78 = vmatpush1.msra.mxu0 0.0
    %79 = vmatprep.subr.mxu0 0.0
    %80 = vmatpush1.msra.mxu0 0.0
    %81 = vmatprep.subr.mxu0 0.0
    %82 = vmatpush1.msra.mxu0 0.0
    %83 = vmatprep.subr.mxu0 0.0
    %84 = vmatpush1.msra.mxu0 %v43
    %85 = vmatprep.subr.mxu0 0.0
    %86 = vmatpush1.msra.mxu0 %v42
    %87 = vmatprep.subr.mxu0 0.0
    %88 = vmatpush2.msra.mxu0 0.0
    %89 = vmatprep.subr.mxu0 0.0
    %90 = vmatpush2.msra.mxu0 0.0
    %91 = vmatprep.subr.mxu0 0.0
    %92 = vmatpush2.msra.mxu0 0.0
    %93 = vmatprep.subr.mxu0 0.0
    %94 = vmatpush2.msra.mxu0 0.0
    %95 = vmatprep.subr.mxu0 0.0
    %96 = vmatpush2.msra.mxu0 0.0
    %97 = vmatprep.subr.mxu0 0.0
    %98 = vmatpush2.msra.mxu0 0.0
    %99 = vmatprep.subr.mxu0 0.0
    %100 = vmatpush2.msra.mxu0 0.0
    %101 = vmatprep.subr.mxu0 0.0
    %102 = vmatpush2.msra.mxu0 0.0
    %103 = vmatprep.subr.mxu0 0.0
    %104 = vmatpush2.msra.mxu0 0.0
    %105 = vmatprep.subr.mxu0 0.0
    %106 = vmatpush2.msra.mxu0 0.0
    %107 = vmatprep.subr.mxu0 0.0
    %108 = vmatpush2.msra.mxu0 0.0
    %109 = vmatprep.subr.mxu0 0.0
    %110 = vmatpush2.msra.mxu0 0.0
    %111 = vmatprep.subr.mxu0 0.0
    %112 = vmatpush2.msra.mxu0 0.0
    %113 = vmatprep.subr.mxu0 0.0
    %114 = vmatpush2.msra.mxu0 0.0
    %115 = vmatprep.subr.mxu0 0.0
    %116 = vmatpush2.msra.mxu0 0.0
    %117 = vmatprep.subr.mxu0 0.0
    %118 = vmatpush2.msra.mxu0 0.0
    %119 = vmatprep.mubr.f32.mxu0 0.0
    %120 = vmatmul.mubr.f32.gmra.mxu0 %v53
    %v121 = vpop.f32.mrf.mxu0
    %v122 = vadd.f32 %v49, %v121
    %v123 = vpop.f32.mrf.mxu0
    %124 = vdwg.mxu0
    %vm125 = vcmask 261120
    %126 = vst.msk [vmem:[#allocation7] sm:$0xff] %vm125, %v122
    // Predicated region
    $region22: #{tpu_custom_call.1} parent=1 // pred_check
      _
    $region23: #{tpu_custom_call.1} parent=1 // pred_check_branch
      %128 = sbr.rel (0) target = $region25
    $region24: #{tpu_custom_call.1} parent=1 // pred_region
      %s130 = ssub.s32 128, 128
      %131 = vsyncadd [#allocation4], %s130
      %s133 = sshll.u32 [#allocation7], 4
      %s134 = int_to_ptr.vmem [resolvable:$true] %s133
      %136 = dma.vmem_to_hbm [thread:$0]  %s134, 128, %s3, [#allocation4]
    $region25: #{tpu_custom_call.1} parent=1 // pred_fallthru
      _
    // Predicated region
    $region26: #{tpu_custom_call.1} parent=1 // pred_check
      _
    $region27: #{tpu_custom_call.1} parent=1 // pred_check_branch
      %138 = sbr.rel (0) target = $region29
    $region28: #{tpu_custom_call.1} parent=1 // pred_region
      %139 = dma.done [#allocation4], 128
    $region29: #{tpu_custom_call.1} parent=1 // pred_fallthru
      _
    %140 = vsyncpa [#allocation3], 1
    %141 = vsyncpa [#allocation6], 1
    %142 = vsyncpa [#allocation4], 1

</llo_original>
